<compile_context>
chip_gen: v7x
topology: tpu7x:2x2x1
jax: 0.10.0
libtpu: 0.0.40
codegen_flags: <defaults>
</compile_context>

<pallas_src>
import jax
import jax.numpy as jnp
from jax import lax
from jax.experimental import pallas as pl
from jax.experimental.pallas import tpu as pltpu


def _round_up(x, m):
    return ((x + m - 1) // m) * m


def _pad_gate_cols(a, H, Hp):
    """(R, 3H) -> (R, 3Hp): each H-wide gate block moved to its own 128-lane slot."""
    blocks = [jnp.pad(a[:, g * H:(g + 1) * H], ((0, 0), (0, Hp - H)))
              for g in range(3)]
    return jnp.concatenate(blocks, axis=1)


def gru_seq_kernel(seqlen_ref,  # SMEM (1,) int32   number of valid steps
                   emb_ref,     # VMEM (S_pad, H)   gathered embedding rows (weight dtype)
                   h0_ref,      # VMEM (1, Hp) f32  initial hidden state, 128-lane padded
                   wih_ref,     # VMEM (H, 3Hp)     W_ih^T, gate blocks 128-aligned [r|z|n]
                   whh_ref,     # VMEM (H, 3Hp)     W_hh^T, gate blocks 128-aligned [r|z|n]
                   bi_ref,      # VMEM (1, 3Hp) f32 b_ih with r/z parts of b_hh folded in
                   bhn_ref,     # VMEM (1, Hp)  f32 n-gate hidden bias (stays inside r*(...))
                   out_ref,     # VMEM (S_pad, Hp) f32 per-step hidden states (lane-dense)
                   gi_ref):     # VMEM scratch (S_pad, 3Hp) f32 batched input projection
    Hp = h0_ref.shape[-1]        # 128-lane gate slot width
    H = whh_ref.shape[0]         # true hidden size == contraction dim (no K padding)
    S_pad = out_ref.shape[0]
    seq_len = seqlen_ref[0]

    # --- Phase 1: batched (non-recurrent) input projection, one MXU matmul. ---
    gi_ref[...] = (
        jnp.dot(emb_ref[...], wih_ref[...], preferred_element_type=jnp.float32)
        + bi_ref[...]
    )

    bhn = bhn_ref[...]           # (1, Hp): a single vreg, harmless to keep live.

    # --- Phase 2: serial recurrence. Hidden state (1, Hp) f32 is the loop carry;
    # W_hh is re-read from VMEM each step (cheap vlds) instead of being pinned in
    # vregs, keeping spills off the latency-critical chain. ---
    def step(t, h):
        gi = gi_ref[pl.ds(t, 1), :]                                   # (1, 3Hp) f32
        h_k = h[:, :H].astype(whh_ref.dtype)                          # (1, H) matmul LHS
        gh = jnp.dot(h_k, whh_ref[...],
                     preferred_element_type=jnp.float32)              # (1, 3Hp) f32

        # PyTorch GRU gate order [r | z | n]; all slices are 128-lane aligned.
        # Fused: one VALU add + one EUP sigmoid cover both r and z slots.
        rz = jax.nn.sigmoid(gi[:, :2 * Hp] + gh[:, :2 * Hp])
        r = rz[:, :Hp]
        z = rz[:, Hp:]
        n = jnp.tanh(gi[:, 2 * Hp:] + r * (gh[:, 2 * Hp:] + bhn))
        h_new = (1.0 - z) * n + z * h
        out_ref[pl.ds(t, 1), :] = h_new                               # lane-dense row store
        return h_new

    # TODO(synk): when a static max length is known, process in small statically
    # unrolled blocks (4-8 steps) so LLO can schedule across steps.
    lax.fori_loop(0, seq_len, step, h0_ref[...])

    # --- Phase 3: zero only the padding tail rows (no-op when seq_len == S_pad). ---
    def zero_row(t, carry):
        out_ref[pl.ds(t, 1), :] = jnp.zeros((1, Hp), jnp.float32)
        return carry
    lax.fori_loop(seq_len, S_pad, zero_row, 0)


def encoder_rnn_forward(token_ids, hidden, embedding, w_ih_t, w_hh_t, b_ih, b_hh,
                        *, weight_dtype=jnp.bfloat16):
    """token_ids: int32 (S,); hidden: (1, 1, H) f32.

    Returns (outputs, hidden): outputs (S, 1, H) = GRU output at every step,
    hidden (1, 1, H) = final hidden state (== outputs[-1]), matching a loop of
    EncoderRNN.forward calls in PyTorch.
    """
    S = int(token_ids.shape[0])
    V, H = embedding.shape
    if S == 0:                                    # empty-sequence guard
        return jnp.zeros((0, 1, H), jnp.float32), hidden
    Hp = _round_up(max(H, 128), 128)              # 128-lane gate slot width
    S_pad = _round_up(max(S, 8), 8)

    # Gather rows from the *unpadded* (V, H) table, then pad only the row axis.
    emb_seq = jnp.take(embedding, token_ids, axis=0)                  # (S, H)
    emb_seq_p = jnp.pad(emb_seq, ((0, S_pad - S), (0, 0))).astype(weight_dtype)
    # TODO(synk): for large S/V, gather in-kernel (scalar-prefetched token_ids +
    # pl.Element(1) row index_map) so row DMAs overlap the batched projection.

    # Weights: contraction axis stays at H (no K padding); gate axis 128-aligned.
    wih_p = _pad_gate_cols(w_ih_t, H, Hp).astype(weight_dtype)        # (H, 3Hp)
    whh_p = _pad_gate_cols(w_hh_t, H, Hp).astype(weight_dtype)        # (H, 3Hp)

    # Fold the r/z hidden biases into the batched input-projection bias; keep the
    # n-gate hidden bias separate (it sits inside the r*(...) term in PyTorch).
    b_fold = jnp.concatenate(
        [b_ih[:, :2 * H] + b_hh[:, :2 * H], b_ih[:, 2 * H:]], axis=1)
    bi_p = _pad_gate_cols(b_fold, H, Hp)                              # (1, 3Hp) f32
    bhn_p = jnp.pad(b_hh[:, 2 * H:], ((0, 0), (0, Hp - H)))           # (1, Hp) f32

    h0_p = jnp.pad(hidden.reshape(1, H).astype(jnp.float32),
                   ((0, 0), (0, Hp - H)))                             # (1, Hp) f32
    seq_len_arr = jnp.array([S], dtype=jnp.int32)                     # dynamic trip count

    out_slab = pl.pallas_call(
        gru_seq_kernel,
        out_shape=jax.ShapeDtypeStruct((S_pad, Hp), jnp.float32),
        in_specs=[
            pl.BlockSpec(memory_space=pltpu.MemorySpace.SMEM),   # seq_len scalar
            pl.BlockSpec(memory_space=pltpu.MemorySpace.VMEM),   # embedded tokens
            pl.BlockSpec(memory_space=pltpu.MemorySpace.VMEM),   # h0
            pl.BlockSpec(memory_space=pltpu.MemorySpace.VMEM),   # W_ih^T
            pl.BlockSpec(memory_space=pltpu.MemorySpace.VMEM),   # W_hh^T
            pl.BlockSpec(memory_space=pltpu.MemorySpace.VMEM),   # folded input bias
            pl.BlockSpec(memory_space=pltpu.MemorySpace.VMEM),   # n-gate hidden bias
        ],
        out_specs=pl.BlockSpec(memory_space=pltpu.MemorySpace.VMEM),
        scratch_shapes=[pltpu.VMEM((S_pad, 3 * Hp), jnp.float32)],
    )(seq_len_arr, emb_seq_p, h0_p, wih_p, whh_p, bi_p, bhn_p)
    # TODO(synk): for long sequences add an S-chunk grid axis ("arbitrary") that
    # streams emb/out via BlockSpec with h in persistent VMEM scratch (v7x 64 MiB
    # VMEM), and a leading "parallel" batch axis when encoding >1 sequence.

    out = out_slab[:S, :H]                                            # strip padding
    outputs = out.reshape(S, 1, H)
    hidden_out = out[S - 1:S].reshape(1, 1, H)
    return outputs, hidden_out


def init_params(key, input_size, hidden_size):
    """Deterministic synthetic parameters (shapes match nn.Embedding / nn.GRU)."""
    H = hidden_size
    k_emb, k_wih, k_whh, k_bih, k_bhh = jax.random.split(key, 5)
    scale = 1.0 / jnp.sqrt(H)
    embedding = jax.random.normal(k_emb, (input_size, H), jnp.float32)
    # PyTorch stores weight_ih_l0 as (3H, H); we keep the transpose for x @ W^T.
    w_ih_t = jax.random.uniform(k_wih, (H, 3 * H), jnp.float32, -scale, scale)
    w_hh_t = jax.random.uniform(k_whh, (H, 3 * H), jnp.float32, -scale, scale)
    b_ih = jax.random.uniform(k_bih, (1, 3 * H), jnp.float32, -scale, scale)
    b_hh = jax.random.uniform(k_bhh, (1, 3 * H), jnp.float32, -scale, scale)
    return embedding, w_ih_t, w_hh_t, b_ih, b_hh


def reference_forward(token_ids, hidden, embedding, w_ih_t, w_hh_t, b_ih, b_hh,
                      compute_dtype=jnp.float32):
    """Pure-JAX reference: PyTorch GRU step applied token-by-token.

    compute_dtype controls only the matmul operand dtype (mirroring the kernel's
    bf16 weight path); accumulation and gate math stay f32.
    """
    H = hidden.shape[-1]
    h = hidden.reshape(1, H).astype(jnp.float32)
    wih = w_ih_t.astype(compute_dtype)
    whh = w_hh_t.astype(compute_dtype)
    outs = []
    for t in range(token_ids.shape[0]):
        x = embedding[token_ids[t]].reshape(1, H).astype(compute_dtype)
        gi = jnp.dot(x, wih, preferred_element_type=jnp.float32) + b_ih
        gh = jnp.dot(h.astype(compute_dtype), whh,
                     preferred_element_type=jnp.float32) + b_hh
        r = jax.nn.sigmoid(gi[:, :H] + gh[:, :H])
        z = jax.nn.sigmoid(gi[:, H:2 * H] + gh[:, H:2 * H])
        n = jnp.tanh(gi[:, 2 * H:] + r * gh[:, 2 * H:])
        h = (1.0 - z) * n + z * h
        outs.append(h)
    outputs = jnp.stack(outs, axis=0)          # (S, 1, H)
    return outputs, h.reshape(1, 1, H)


if __name__ == "__main__":
    input_size = 64    # vocabulary size
    hidden_size = 32
    seq_len = 8

    key = jax.random.PRNGKey(0)
    params = init_params(key, input_size, hidden_size)

    token_ids = jnp.array([7, 3, 0, 42, 63, 11, 7, 25], dtype=jnp.int32)
    hidden0 = jnp.zeros((1, 1, hidden_size), dtype=jnp.float32)   # initHidden()

    # f32 weight path: must match the step-by-step f32 reference tightly.
    out_f32, hid_f32 = encoder_rnn_forward(token_ids, hidden0, *params,
                                           weight_dtype=jnp.float32)
    out_f32 = jax.block_until_ready(out_f32)
    hid_f32 = jax.block_until_ready(hid_f32)
    ref_f32, ref_h_f32 = reference_forward(token_ids, hidden0, *params,
                                           compute_dtype=jnp.float32)
    assert out_f32.shape == (seq_len, 1, hidden_size)
    assert hid_f32.shape == (1, 1, hidden_size)
    assert jnp.allclose(out_f32, ref_f32, atol=1e-5, rtol=1e-5), "f32 output mismatch"
    assert jnp.allclose(hid_f32, ref_h_f32, atol=1e-5, rtol=1e-5), "f32 hidden mismatch"

    # bf16 weight path (default, MXU-native): compare against a reference that
    # casts its matmul operands the same way.
    out_bf, hid_bf = encoder_rnn_forward(token_ids, hidden0, *params)
    out_bf = jax.block_until_ready(out_bf)
    hid_bf = jax.block_until_ready(hid_bf)
    ref_bf, ref_h_bf = reference_forward(token_ids, hidden0, *params,
                                         compute_dtype=jnp.bfloat16)
    assert jnp.allclose(out_bf, ref_bf, atol=5e-3, rtol=5e-3), "bf16 output mismatch"
    assert jnp.allclose(hid_bf, ref_h_bf, atol=5e-3, rtol=5e-3), "bf16 hidden mismatch"

    print("KERNEL_OK")
</pallas_src>

<mosaic_0001>
module attributes {stable_mosaic.version = 11 : i64} {
  func.func @gru_seq_kernel(%arg0: memref<1xi32, #tpu.memory_space<smem>>, %arg1: memref<8x32xf32, #tpu.memory_space<vmem>>, %arg2: memref<1x128xf32, #tpu.memory_space<vmem>>, %arg3: memref<32x384xf32, #tpu.memory_space<vmem>>, %arg4: memref<32x384xf32, #tpu.memory_space<vmem>>, %arg5: memref<1x384xf32, #tpu.memory_space<vmem>>, %arg6: memref<1x128xf32, #tpu.memory_space<vmem>>, %arg7: memref<8x128xf32, #tpu.memory_space<vmem>>, %arg8: memref<8x384xf32, #tpu.memory_space<vmem>>) attributes {dimension_semantics = [], scalar_prefetch = 0 : i64, scratch_operands = 1 : i64, tpu.core_type = #tpu.core_type<tc>} {
    %c0 = arith.constant 0 : index
    %0 = memref.load %arg0[%c0] : memref<1xi32, #tpu.memory_space<smem>>
    %c0_0 = arith.constant 0 : index
    %c0_1 = arith.constant 0 : index
    %1 = vector.load %arg1[%c0_0, %c0_1] : memref<8x32xf32, #tpu.memory_space<vmem>>, vector<8x32xf32>
    %c0_2 = arith.constant 0 : index
    %c0_3 = arith.constant 0 : index
    %2 = vector.load %arg3[%c0_2, %c0_3] : memref<32x384xf32, #tpu.memory_space<vmem>>, vector<32x384xf32>
    %cst = arith.constant dense<0.000000e+00> : vector<8x384xf32>
    %3 = tpu.matmul %1, %2, %cst {dimension_numbers = #tpu.dot_dimension_numbers<[1], [0], [0], [1], [0, 0, 1, 1], [], []>} : vector<8x32xf32>, vector<32x384xf32>, vector<8x384xf32> -> vector<8x384xf32>
    %c0_4 = arith.constant 0 : index
    %c0_5 = arith.constant 0 : index
    %4 = vector.load %arg5[%c0_4, %c0_5] : memref<1x384xf32, #tpu.memory_space<vmem>>, vector<1x384xf32>
    %5 = vector.broadcast %4 : vector<1x384xf32> to vector<8x384xf32>
    %6 = arith.addf %3, %5 : vector<8x384xf32>
    %c0_6 = arith.constant 0 : index
    %c0_7 = arith.constant 0 : index
    %7 = vector.load %arg8[%c0_6, %c0_7] : memref<8x384xf32, #tpu.memory_space<vmem>>, vector<8x384xf32>
    tpu.vector_store %arg8[%c0_6, %c0_7], %6 {strides = array<i32>} : memref<8x384xf32, #tpu.memory_space<vmem>>, vector<8x384xf32>,
    %c0_8 = arith.constant 0 : index
    %c0_9 = arith.constant 0 : index
    %8 = vector.load %arg6[%c0_8, %c0_9] : memref<1x128xf32, #tpu.memory_space<vmem>>, vector<1x128xf32>
    %c0_10 = arith.constant 0 : index
    %c0_11 = arith.constant 0 : index
    %9 = vector.load %arg2[%c0_10, %c0_11] : memref<1x128xf32, #tpu.memory_space<vmem>>, vector<1x128xf32>
    %c0_i32 = arith.constant 0 : i32
    %10 = arith.subi %0, %c0_i32 : i32
    %11 = arith.addi %c0_i32, %10 : i32
    %c1_i32 = arith.constant 1 : i32
    %12 = scf.for %arg9 = %c0_i32 to %11 step %c1_i32 iter_args(%arg10 = %9) -> (vector<1x128xf32>)  : i32 {
      %15 = arith.index_cast %arg9 : i32 to index
      %c0_14 = arith.constant 0 : index
      %16 = vector.load %arg8[%15, %c0_14] : memref<8x384xf32, #tpu.memory_space<vmem>>, vector<1x384xf32>
      %17 = vector.extract_strided_slice %arg10 {offsets = [0, 0], sizes = [1, 32], strides = [1, 1]} : vector<1x128xf32> to vector<1x32xf32>
      %c0_15 = arith.constant 0 : index
      %c0_16 = arith.constant 0 : index
      %18 = vector.load %arg4[%c0_15, %c0_16] : memref<32x384xf32, #tpu.memory_space<vmem>>, vector<32x384xf32>
      %cst_17 = arith.constant dense<0.000000e+00> : vector<1x384xf32>
      %19 = tpu.matmul %17, %18, %cst_17 {dimension_numbers = #tpu.dot_dimension_numbers<[1], [0], [0], [1], [0, 0, 1, 1], [], []>} : vector<1x32xf32>, vector<32x384xf32>, vector<1x384xf32> -> vector<1x384xf32>
      %20 = vector.extract_strided_slice %16 {offsets = [0, 0], sizes = [1, 256], strides = [1, 1]} : vector<1x384xf32> to vector<1x256xf32>
      %21 = vector.extract_strided_slice %19 {offsets = [0, 0], sizes = [1, 256], strides = [1, 1]} : vector<1x384xf32> to vector<1x256xf32>
      %22 = arith.addf %20, %21 : vector<1x256xf32>
      %23 = arith.negf %22 : vector<1x256xf32>
      %24 = math.exp %23 : vector<1x256xf32>
      %cst_18 = arith.constant 1.000000e+00 : f32
      %25 = vector.broadcast %cst_18 : f32 to vector<1x256xf32>
      %26 = arith.addf %25, %24 : vector<1x256xf32>
      %27 = arith.divf %25, %26 : vector<1x256xf32>
      %28 = vector.extract_strided_slice %27 {offsets = [0, 0], sizes = [1, 128], strides = [1, 1]} : vector<1x256xf32> to vector<1x128xf32>
      %29 = vector.extract_strided_slice %27 {offsets = [0, 128], sizes = [1, 128], strides = [1, 1]} : vector<1x256xf32> to vector<1x128xf32>
      %30 = vector.extract_strided_slice %16 {offsets = [0, 256], sizes = [1, 128], strides = [1, 1]} : vector<1x384xf32> to vector<1x128xf32>
      %31 = vector.extract_strided_slice %19 {offsets = [0, 256], sizes = [1, 128], strides = [1, 1]} : vector<1x384xf32> to vector<1x128xf32>
      %32 = arith.addf %31, %8 : vector<1x128xf32>
      %33 = arith.mulf %28, %32 : vector<1x128xf32>
      %34 = arith.addf %30, %33 : vector<1x128xf32>
      %35 = math.tanh %34 : vector<1x128xf32>
      %cst_19 = arith.constant 1.000000e+00 : f32
      %36 = vector.broadcast %cst_19 : f32 to vector<1x128xf32>
      %37 = arith.subf %36, %29 : vector<1x128xf32>
      %38 = arith.mulf %37, %35 : vector<1x128xf32>
      %39 = arith.mulf %29, %arg10 : vector<1x128xf32>
      %40 = arith.addf %38, %39 : vector<1x128xf32>
      %41 = arith.index_cast %arg9 : i32 to index
      %c0_20 = arith.constant 0 : index
      %42 = vector.load %arg7[%41, %c0_20] : memref<8x128xf32, #tpu.memory_space<vmem>>, vector<1x128xf32>
      tpu.vector_store %arg7[%41, %c0_20], %40 {strides = array<i32>} : memref<8x128xf32, #tpu.memory_space<vmem>>, vector<1x128xf32>,
      scf.yield %40 : vector<1x128xf32>
    }
    %c0_i32_12 = arith.constant 0 : i32
    %c8_i32 = arith.constant 8 : i32
    %13 = arith.subi %c8_i32, %0 : i32
    %14 = arith.addi %0, %13 : i32
    %c1_i32_13 = arith.constant 1 : i32
    scf.for %arg9 = %0 to %14 step %c1_i32_13  : i32 {
      %cst_14 = arith.constant 0.000000e+00 : f32
      %15 = vector.broadcast %cst_14 : f32 to vector<1x128xf32>
      %16 = arith.index_cast %arg9 : i32 to index
      %c0_15 = arith.constant 0 : index
      %17 = vector.load %arg7[%16, %c0_15] : memref<8x128xf32, #tpu.memory_space<vmem>>, vector<1x128xf32>
      tpu.vector_store %arg7[%16, %c0_15], %15 {strides = array<i32>} : memref<8x128xf32, #tpu.memory_space<vmem>>, vector<1x128xf32>,
    }
    return
  }
}

</mosaic_0001>

<llo_original>
// kernel: tpu_custom_call.1
$region0: #{tpu_custom_call.1}
  #allocation0 [shape = 'u32[]', space=smem, size = 0x4, offset = 0x4, fixed_abs, tag = 'smem constant byte address 0x4 - core index']
  #allocation1 [shape = 'u32[144,128]{1,0:T(1,128)}', space=vmem, size = 0x12000, scoped, tag = 'internal scratch']
  #allocation2 [shape = 'f32[8,384]{1,0:T(8,128)}', space=vmem, size = 0x3000, scoped, tag = 'scratch operand']
  #allocation3 [shape = 's32[1]{0:T(128)S(6)}', space=smem, size = 0x200, scoped, tag = 'scoped memory for tpu_custom_call.1']
  %s0 = inlined_call_operand.<no memory space> [shape: s32[1], index: 0, kind: input, shape index: {}]
  %s1 = inlined_call_operand.hbm [shape: f32[8,32], index: 1, kind: input, shape index: {}]
  %s2 = inlined_call_operand.vmem [shape: f32[1,128], index: 2, kind: input, shape index: {}]
  %s3 = inlined_call_operand.hbm [shape: f32[32,384], index: 3, kind: input, shape index: {}]
  %s4 = inlined_call_operand.hbm [shape: f32[32,384], index: 4, kind: input, shape index: {}]
  %s5 = inlined_call_operand.vmem [shape: f32[1,384], index: 5, kind: input, shape index: {}]
  %s6 = inlined_call_operand.vmem [shape: f32[1,128], index: 6, kind: input, shape index: {}]
  %s7 = inlined_call_operand.hbm [shape: f32[8,128], index: 7, kind: output, shape index: {}]
  %s8 = sld [smem:[#allocation0]]
  $region64: #{tpu_custom_call.1} parent=0
    _
  %s10 = ssub.s32 1, %s8
  %s11 = scalar_select 0, %s10, %s8
  %12 = sst [smem:[#allocation3]] %s0
  $region1: #{tpu_custom_call.1} parent=0
    #allocation4 [shape = 'u8[4096]{0}', space=vmem, size = 0x1000, scoped, tag = 'input window, operand 1, single buffered']
    #allocation5 [shape = 's32[1]{0}', space=sflag, size = 0x4, scoped, tag = 'scoped memory for tpu_custom_call.1']
    #allocation6 [shape = 's32[1]{0}', space=sflag, size = 0x4, scoped, tag = 'scoped memory for tpu_custom_call.1']
    #allocation7 [shape = 'u8[49152]{0}', space=vmem, size = 0xc000, scoped, tag = 'input window, operand 3, single buffered']
    #allocation8 [shape = 's32[1]{0}', space=sflag, size = 0x4, scoped, tag = 'scoped memory for tpu_custom_call.1']
    #allocation9 [shape = 'u8[49152]{0}', space=vmem, size = 0xc000, scoped, tag = 'input window, operand 4, single buffered']
    #allocation10 [shape = 'u8[4096]{0}', space=vmem, size = 0x1000, scoped, tag = 'output window, operand 0, single buffered']
    %13 = vsyncpa [#allocation5], 0
    %14 = vsyncpa [#allocation8], 0
    %15 = vsyncpa [#allocation6], 0
    // Predicated region
    $region2: #{tpu_custom_call.1} parent=1 // pred_check
      _
    $region3: #{tpu_custom_call.1} parent=1 // pred_check_branch
      %17 = sbr.rel (0) target = $region5
    $region4: #{tpu_custom_call.1} parent=1 // pred_region
      _
    $region5: #{tpu_custom_call.1} parent=1 // pred_fallthru
      _
    // Predicated region
    $region6: #{tpu_custom_call.1} parent=1 // pred_check
      _
    $region7: #{tpu_custom_call.1} parent=1 // pred_check_branch
      %19 = sbr.rel (0) target = $region9
    $region8: #{tpu_custom_call.1} parent=1 // pred_region
      %s21 = ssub.s32 128, 128
      %22 = vsyncadd [#allocation5], %s21
      %s24 = sshll.u32 [#allocation4], 4
      %s25 = int_to_ptr.vmem [resolvable:$true] %s24
      %27 = dma.hbm_to_vmem [thread:$0]  %s1, 128, %s25, [#allocation5]
    $region9: #{tpu_custom_call.1} parent=1 // pred_fallthru
      _
    // Predicated region
    $region10: #{tpu_custom_call.1} parent=1 // pred_check
      _
    $region11: #{tpu_custom_call.1} parent=1 // pred_check_branch
      %29 = sbr.rel (0) target = $region13
    $region12: #{tpu_custom_call.1} parent=1 // pred_region
      _
    $region13: #{tpu_custom_call.1} parent=1 // pred_fallthru
      _
    // Predicated region
    $region14: #{tpu_custom_call.1} parent=1 // pred_check
      _
    $region15: #{tpu_custom_call.1} parent=1 // pred_check_branch
      %31 = sbr.rel (0) target = $region17
    $region16: #{tpu_custom_call.1} parent=1 // pred_region
      %s33 = ssub.s32 1536, 1536
      %34 = vsyncadd [#allocation8], %s33
      %s35 = sshll.u32 [#allocation7], 4
      %s36 = int_to_ptr.vmem [resolvable:$true] %s35
      %41 = dma.hbm_to_vmem [thread:$0]  %s3, 1536, %s36, [#allocation8], 384, 384, 24
    $region17: #{tpu_custom_call.1} parent=1 // pred_fallthru
      _
    // Predicated region
    $region18: #{tpu_custom_call.1} parent=1 // pred_check
      _
    $region19: #{tpu_custom_call.1} parent=1 // pred_check_branch
      %43 = sbr.rel (0) target = $region21
    $region20: #{tpu_custom_call.1} parent=1 // pred_region
      %s45 = ssub.s32 1536, 1536
      %46 = vsyncadd [#allocation8], %s45
      %s47 = sshll.u32 [#allocation9], 4
      %s48 = int_to_ptr.vmem [resolvable:$true] %s47
      %53 = dma.hbm_to_vmem [thread:$0]  %s4, 1536, %s48, [#allocation8], 384, 384, 24
    $region21: #{tpu_custom_call.1} parent=1 // pred_fallthru
      _
    // Predicated region
    $region22: #{tpu_custom_call.1} parent=1 // pred_check
      _
    $region23: #{tpu_custom_call.1} parent=1 // pred_check_branch
      %55 = sbr.rel (0) target = $region25
    $region24: #{tpu_custom_call.1} parent=1 // pred_region
      _
    $region25: #{tpu_custom_call.1} parent=1 // pred_fallthru
      _
    // Predicated region
    $region26: #{tpu_custom_call.1} parent=1 // pred_check
      _
    $region27: #{tpu_custom_call.1} parent=1 // pred_check_branch
      %57 = sbr.rel (0) target = $region29
    $region28: #{tpu_custom_call.1} parent=1 // pred_region
      _
    $region29: #{tpu_custom_call.1} parent=1 // pred_fallthru
      _
    // Predicated region
    $region30: #{tpu_custom_call.1} parent=1 // pred_check
      _
    $region31: #{tpu_custom_call.1} parent=1 // pred_check_branch
      %59 = sbr.rel (0) target = $region33
    $region32: #{tpu_custom_call.1} parent=1 // pred_region
      %60 = dma.done [#allocation5], 128
    $region33: #{tpu_custom_call.1} parent=1 // pred_fallthru
      _
    // Predicated region
    $region34: #{tpu_custom_call.1} parent=1 // pred_check
      _
    $region35: #{tpu_custom_call.1} parent=1 // pred_check_branch
      %62 = sbr.rel (0) target = $region37
    $region36: #{tpu_custom_call.1} parent=1 // pred_region
      %63 = dma.done [#allocation8], 1536
    $region37: #{tpu_custom_call.1} parent=1 // pred_fallthru
      _
    // Predicated region
    $region38: #{tpu_custom_call.1} parent=1 // pred_check
      _
    $region39: #{tpu_custom_call.1} parent=1 // pred_check_branch
      %65 = sbr.rel (0) target = $region41
    $region40: #{tpu_custom_call.1} parent=1 // pred_region
      %66 = dma.done [#allocation8], 1536
    $region41: #{tpu_custom_call.1} parent=1 // pred_fallthru
      _
    %s67 = sld [smem:[#allocation3]]
    %v68 = vld [vmem:[#allocation4] sm:$0xff]
    %v69 = vld [vmem:[#allocation7] sm:$0xff]
    %v70 = vld [vmem:[#allocation7 + $0x8] sm:$0xff]
    %v71 = vld [vmem:[#allocation7 + $0x10] sm:$0xff]
    %v72 = vld [vmem:[#allocation7 + $0x18] sm:$0xff]
    %v73 = vld [vmem:[#allocation7 + $0x20] sm:$0xff]
    %v74 = vld [vmem:[#allocation7 + $0x28] sm:$0xff]
    %v75 = vld [vmem:[#allocation7 + $0x30] sm:$0xff]
    %v76 = vld [vmem:[#allocation7 + $0x38] sm:$0xff]
    %v77 = vld [vmem:[#allocation7 + $0x40] sm:$0xff]
    %v78 = vld [vmem:[#allocation7 + $0x48] sm:$0xff]
    %v79 = vld [vmem:[#allocation7 + $0x50] sm:$0xff]
    %v80 = vld [vmem:[#allocation7 + $0x58] sm:$0xff]
    %v81 = vld [vmem:[%s5] sm:$0x7]
    %v83 = vlaneseq
    %v84 = vshrl.u32 %v83, 7
    %v85 = vsub.s32 0, %v84
    %v86 = vrot.slane %v81, %v85
    %v87 = vlaneseq
    %v88 = vshrl.u32 %v87, 7
    %v89 = vsub.s32 1, %v88
    %v90 = vrot.slane %v81, %v89
    %v91 = vlaneseq
    %v92 = vshrl.u32 %v91, 7
    %v93 = vsub.s32 2, %v92
    %v94 = vrot.slane %v81, %v93
    %vm98 = vcmask 261120
    %v100 = vsel %vm98, %v68, 0
    %102 = vmatprep.subr.mxu0 %v70
    %103 = vmatpush1.msra.mxu0 %v69
    %104 = vmatprep.subr.mxu0 %v73
    %105 = vmatpush1.msra.mxu0 %v72
    %106 = vmatprep.subr.mxu0 %v76
    %107 = vmatpush1.msra.mxu0 %v75
    %108 = vmatprep.subr.mxu0 %v79
    %109 = vmatpush1.msra.mxu0 %v78
    %110 = vmatprep.subr.mxu0 0.0
    %111 = vmatpush1.msra.mxu0 0.0
    %112 = vmatprep.subr.mxu0 0.0
    %113 = vmatpush1.msra.mxu0 0.0
    %114 = vmatprep.subr.mxu0 0.0
    %115 = vmatpush1.msra.mxu0 0.0
    %116 = vmatprep.subr.mxu0 0.0
    %117 = vmatpush1.msra.mxu0 0.0
    %118 = vmatprep.subr.mxu0 0.0
    %119 = vmatpush1.msra.mxu0 0.0
    %120 = vmatprep.subr.mxu0 0.0
    %121 = vmatpush1.msra.mxu0 0.0
    %122 = vmatprep.subr.mxu0 0.0
    %123 = vmatpush1.msra.mxu0 0.0
    %124 = vmatprep.subr.mxu0 0.0
    %125 = vmatpush1.msra.mxu0 0.0
    %126 = vmatprep.subr.mxu0 0.0
    %127 = vmatpush1.msra.mxu0 0.0
    %128 = vmatprep.subr.mxu0 0.0
    %129 = vmatpush1.msra.mxu0 0.0
    %130 = vmatprep.subr.mxu0 0.0
    %131 = vmatpush1.msra.mxu0 0.0
    %132 = vmatprep.subr.mxu0 0.0
    %133 = vmatpush1.msra.mxu0 0.0
    %134 = vmatprep.subr.mxu0 0.0
    %135 = vmatpush1.msra.mxu0 0.0
    %136 = vmatprep.subr.mxu0 0.0
    %137 = vmatpush1.msra.mxu0 0.0
    %138 = vmatprep.subr.mxu0 0.0
    %139 = vmatpush1.msra.mxu0 0.0
    %140 = vmatprep.subr.mxu0 0.0
    %141 = vmatpush1.msra.mxu0 0.0
    %142 = vmatprep.subr.mxu0 0.0
    %143 = vmatpush1.msra.mxu0 0.0
    %144 = vmatprep.subr.mxu0 0.0
    %145 = vmatpush1.msra.mxu0 0.0
    %146 = vmatprep.subr.mxu0 0.0
    %147 = vmatpush1.msra.mxu0 0.0
    %148 = vmatprep.subr.mxu0 0.0
    %149 = vmatpush1.msra.mxu0 0.0
    %150 = vmatprep.subr.mxu0 0.0
    %151 = vmatpush1.msra.mxu0 0.0
    %152 = vmatprep.subr.mxu0 0.0
    %153 = vmatpush1.msra.mxu0 0.0
    %154 = vmatprep.subr.mxu0 0.0
    %155 = vmatpush1.msra.mxu0 0.0
    %156 = vmatprep.subr.mxu0 0.0
    %157 = vmatpush1.msra.mxu0 0.0
    %158 = vmatprep.subr.mxu0 0.0
    %159 = vmatpush1.msra.mxu0 0.0
    %160 = vmatprep.subr.mxu0 0.0
    %161 = vmatpush1.msra.mxu0 0.0
    %162 = vmatprep.subr.mxu0 0.0
    %163 = vmatpush1.msra.mxu0 0.0
    %164 = vmatprep.subr.mxu0 0.0
    %165 = vmatpush1.msra.mxu0 0.0
    %166 = vmatprep.mubr.f32.mxu0 0.0
    %167 = vmatmul.mubr.f32.gmra.mrb[0].mxu0 %v100
    %v168 = vpop.f32.mrb[0].mxu0
    %v169 = vadd.f32 %v86, %v168
    %v170 = vpop.f32.mrb[0].mxu0
    %v171 = vadd.f32 %v90, %v170
    %172 = vdwg.mxu0
    %173 = vmatprep.subr.mxu0 0.0
    %174 = vmatpush1.msra.mxu0 %v71
    %175 = vmatprep.subr.mxu0 0.0
    %176 = vmatpush1.msra.mxu0 %v74
    %177 = vmatprep.subr.mxu0 0.0
    %178 = vmatpush1.msra.mxu0 %v77
    %179 = vmatprep.subr.mxu0 0.0
    %180 = vmatpush1.msra.mxu0 %v80
    %181 = vmatprep.subr.mxu0 0.0
    %182 = vmatpush1.msra.mxu0 0.0
    %183 = vmatprep.subr.mxu0 0.0
    %184 = vmatpush1.msra.mxu0 0.0
    %185 = vmatprep.subr.mxu0 0.0
    %186 = vmatpush1.msra.mxu0 0.0
    %187 = vmatprep.subr.mxu0 0.0
    %188 = vmatpush1.msra.mxu0 0.0
    %189 = vmatprep.subr.mxu0 0.0
    %190 = vmatpush1.msra.mxu0 0.0
    %191 = vmatprep.subr.mxu0 0.0
    %192 = vmatpush1.msra.mxu0 0.0
    %193 = vmatprep.subr.mxu0 0.0
    %194 = vmatpush1.msra.mxu0 0.0
    %195 = vmatprep.subr.mxu0 0.0
    %196 = vmatpush1.msra.mxu0 0.0
    %197 = vmatprep.subr.mxu0 0.0
    %198 = vmatpush1.msra.mxu0 0.0
    %199 = vmatprep.subr.mxu0 0.0
    %200 = vmatpush1.msra.mxu0 0.0
    %201 = vmatprep.subr.mxu0 0.0
    %202 = vmatpush1.msra.mxu0 0.0
    %203 = vmatprep.subr.mxu0 0.0
    %204 = vmatpush1.msra.mxu0 0.0
    %205 = vmatprep.subr.mxu0 0.0
    %206 = vmatpush1.msra.mxu0 0.0
    %207 = vmatprep.subr.mxu0 0.0
    %208 = vmatpush1.msra.mxu0 0.0
    %209 = vmatprep.subr.mxu0 0.0
    %210 = vmatpush1.msra.mxu0 0.0
    %211 = vmatprep.subr.mxu0 0.0
    %212 = vmatpush1.msra.mxu0 0.0
    %213 = vmatprep.subr.mxu0 0.0
    %214 = vmatpush1.msra.mxu0 0.0
    %215 = vmatprep.subr.mxu0 0.0
    %216 = vmatpush1.msra.mxu0 0.0
    %217 = vmatprep.subr.mxu0 0.0
    %218 = vmatpush1.msra.mxu0 0.0
    %219 = vmatprep.subr.mxu0 0.0
    %220 = vmatpush1.msra.mxu0 0.0
    %221 = vmatprep.subr.mxu0 0.0
    %222 = vmatpush1.msra.mxu0 0.0
    %223 = vmatprep.subr.mxu0 0.0
    %224 = vmatpush1.msra.mxu0 0.0
    %225 = vmatprep.subr.mxu0 0.0
    %226 = vmatpush1.msra.mxu0 0.0
    %227 = vmatprep.subr.mxu0 0.0
    %228 = vmatpush1.msra.mxu0 0.0
    %229 = vmatprep.subr.mxu0 0.0
    %230 = vmatpush1.msra.mxu0 0.0
    %231 = vmatprep.subr.mxu0 0.0
    %232 = vmatpush1.msra.mxu0 0.0
    %233 = vmatprep.subr.mxu0 0.0
    %234 = vmatpush1.msra.mxu0 0.0
    %235 = vmatprep.subr.mxu0 0.0
    %236 = vmatpush1.msra.mxu0 0.0
    %237 = vmatprep.mubr.f32.mxu0 0.0
    %238 = vmatmul.mubr.f32.gmra.mrb[0].mxu0 %v100
    %v239 = vpop.f32.mrb[0].mxu0
    %v240 = vadd.f32 %v94, %v239
    %v241 = vpop.f32.mrb[0].mxu0
    %242 = vdwg.mxu0
    %243 = vst [vmem:[#allocation2] sm:$0xff] %v169
    %244 = vst [vmem:[#allocation2 + $0x8] sm:$0xff] %v171
    %245 = vst [vmem:[#allocation2 + $0x10] sm:$0xff] %v240
    %v246 = vld [vmem:[%s6] sm:$0x1]
    %v247 = vld [vmem:[%s2] sm:$0x1]
    // While loop
    $region42: #{tpu_custom_call.1} parent=1 // loop_pre_header
      _
    $region43: #{tpu_custom_call.1} parent=1 // loop_header
      %s249 = sphi 0, %s251
      %p250 = scmp.ge.s32.totalorder %s249, %s67
      %v254 = vphi %v247, %v458
    $region44: #{tpu_custom_call.1} parent=1 // loop_header_branch
      %253 = sbr.rel (%p250) target = $region48
    $region45: #{tpu_custom_call.1} parent=1 // loop_body
      %s255 = sshra.s32 %s249, 3
      %s256 = sand.u32 %s249, 7
      %s257 = sshra.s32 %s249, 3
      %s258 = sand.u32 %s249, 7
      %s259 = smul.u32 %s255, 3
      %s260 = smul.u32 %s259, 8
      %s261 = sadd.s32 %s260, %s258
      %s262 = scalar_lea.vmem [#allocation2], %s261
      %v263 = vld [vmem:[%s262] ss:$8 sm:$0x7]
      %v264 = vld [vmem:[#allocation9] sm:$0xff]
      %v265 = vld [vmem:[#allocation9 + $0x8] sm:$0xff]
      %v266 = vld [vmem:[#allocation9 + $0x10] sm:$0xff]
      %v267 = vld [vmem:[#allocation9 + $0x18] sm:$0xff]
      %v268 = vld [vmem:[#allocation9 + $0x20] sm:$0xff]
      %v269 = vld [vmem:[#allocation9 + $0x28] sm:$0xff]
      %v270 = vld [vmem:[#allocation9 + $0x30] sm:$0xff]
      %v271 = vld [vmem:[#allocation9 + $0x38] sm:$0xff]
      %v272 = vld [vmem:[#allocation9 + $0x40] sm:$0xff]
      %v273 = vld [vmem:[#allocation9 + $0x48] sm:$0xff]
      %v274 = vld [vmem:[#allocation9 + $0x50] sm:$0xff]
      %v275 = vld [vmem:[#allocation9 + $0x58] sm:$0xff]
      %v277 = vsel %vm98, %v254, 0
      %279 = vmatprep.subr.mxu0 %v265
      %280 = vmatpush1.msra.mxu0 %v264
      %281 = vmatprep.subr.mxu0 %v268
      %282 = vmatpush1.msra.mxu0 %v267
      %283 = vmatprep.subr.mxu0 %v271
      %284 = vmatpush1.msra.mxu0 %v270
      %285 = vmatprep.subr.mxu0 %v274
      %286 = vmatpush1.msra.mxu0 %v273
      %287 = vmatprep.subr.mxu0 0.0
      %288 = vmatpush1.msra.mxu0 0.0
      %289 = vmatprep.subr.mxu0 0.0
      %290 = vmatpush1.msra.mxu0 0.0
      %291 = vmatprep.subr.mxu0 0.0
      %292 = vmatpush1.msra.mxu0 0.0
      %293 = vmatprep.subr.mxu0 0.0
      %294 = vmatpush1.msra.mxu0 0.0
      %295 = vmatprep.subr.mxu0 0.0
      %296 = vmatpush1.msra.mxu0 0.0
      %297 = vmatprep.subr.mxu0 0.0
      %298 = vmatpush1.msra.mxu0 0.0
      %299 = vmatprep.subr.mxu0 0.0
      %300 = vmatpush1.msra.mxu0 0.0
      %301 = vmatprep.subr.mxu0 0.0
      %302 = vmatpush1.msra.mxu0 0.0
      %303 = vmatprep.subr.mxu0 0.0
      %304 = vmatpush1.msra.mxu0 0.0
      %305 = vmatprep.subr.mxu0 0.0
      %306 = vmatpush1.msra.mxu0 0.0
      %307 = vmatprep.subr.mxu0 0.0
      %308 = vmatpush1.msra.mxu0 0.0
      %309 = vmatprep.subr.mxu0 0.0
      %310 = vmatpush1.msra.mxu0 0.0
      %311 = vmatprep.subr.mxu0 0.0
      %312 = vmatpush1.msra.mxu0 0.0
      %313 = vmatprep.subr.mxu0 0.0
      %314 = vmatpush1.msra.mxu0 0.0
      %315 = vmatprep.subr.mxu0 0.0
      %316 = vmatpush1.msra.mxu0 0.0
      %317 = vmatprep.subr.mxu0 0.0
      %318 = vmatpush1.msra.mxu0 0.0
      %319 = vmatprep.subr.mxu0 0.0
      %320 = vmatpush1.msra.mxu0 0.0
      %321 = vmatprep.subr.mxu0 0.0
      %322 = vmatpush1.msra.mxu0 0.0
      %323 = vmatprep.subr.mxu0 0.0
      %324 = vmatpush1.msra.mxu0 0.0
      %325 = vmatprep.subr.mxu0 0.0
      %326 = vmatpush1.msra.mxu0 0.0
      %327 = vmatprep.subr.mxu0 0.0
      %328 = vmatpush1.msra.mxu0 0.0
      %329 = vmatprep.subr.mxu0 0.0
      %330 = vmatpush1.msra.mxu0 0.0
      %331 = vmatprep.subr.mxu0 0.0
      %332 = vmatpush1.msra.mxu0 0.0
      %333 = vmatprep.subr.mxu0 0.0
      %334 = vmatpush1.msra.mxu0 0.0
      %335 = vmatprep.subr.mxu0 0.0
      %336 = vmatpush1.msra.mxu0 0.0
      %337 = vmatprep.subr.mxu0 0.0
      %338 = vmatpush1.msra.mxu0 0.0
      %339 = vmatprep.subr.mxu0 0.0
      %340 = vmatpush1.msra.mxu0 0.0
      %341 = vmatprep.subr.mxu0 0.0
      %342 = vmatpush1.msra.mxu0 0.0
      %343 = vmatprep.mubr.f32.mxu0 0.0
      %344 = vmatmul.mubr.f32.gmra.mrb[0].mxu0 %v277
      %v345 = vpop.f32.mrb[0].mxu0
      %v346 = vadd.f32 0.0, %v345
      %v347 = vpop.f32.mrb[0].mxu0
      %v348 = vadd.f32 0.0, %v347
      %349 = vdwg.mxu0
      %350 = vmatprep.subr.mxu0 0.0
      %351 = vmatpush1.msra.mxu0 %v266
      %352 = vmatprep.subr.mxu0 0.0
      %353 = vmatpush1.msra.mxu0 %v269
      %354 = vmatprep.subr.mxu0 0.0
      %355 = vmatpush1.msra.mxu0 %v272
      %356 = vmatprep.subr.mxu0 0.0
      %357 = vmatpush1.msra.mxu0 %v275
      %358 = vmatprep.subr.mxu0 0.0
      %359 = vmatpush1.msra.mxu0 0.0
      %360 = vmatprep.subr.mxu0 0.0
      %361 = vmatpush1.msra.mxu0 0.0
      %362 = vmatprep.subr.mxu0 0.0
      %363 = vmatpush1.msra.mxu0 0.0
      %364 = vmatprep.subr.mxu0 0.0
      %365 = vmatpush1.msra.mxu0 0.0
      %366 = vmatprep.subr.mxu0 0.0
      %367 = vmatpush1.msra.mxu0 0.0
      %368 = vmatprep.subr.mxu0 0.0
      %369 = vmatpush1.msra.mxu0 0.0
      %370 = vmatprep.subr.mxu0 0.0
      %371 = vmatpush1.msra.mxu0 0.0
      %372 = vmatprep.subr.mxu0 0.0
      %373 = vmatpush1.msra.mxu0 0.0
      %374 = vmatprep.subr.mxu0 0.0
      %375 = vmatpush1.msra.mxu0 0.0
      %376 = vmatprep.subr.mxu0 0.0
      %377 = vmatpush1.msra.mxu0 0.0
      %378 = vmatprep.subr.mxu0 0.0
      %379 = vmatpush1.msra.mxu0 0.0
      %380 = vmatprep.subr.mxu0 0.0
      %381 = vmatpush1.msra.mxu0 0.0
      %382 = vmatprep.subr.mxu0 0.0
      %383 = vmatpush1.msra.mxu0 0.0
      %384 = vmatprep.subr.mxu0 0.0
      %385 = vmatpush1.msra.mxu0 0.0
      %386 = vmatprep.subr.mxu0 0.0
      %387 = vmatpush1.msra.mxu0 0.0
      %388 = vmatprep.subr.mxu0 0.0
      %389 = vmatpush1.msra.mxu0 0.0
      %390 = vmatprep.subr.mxu0 0.0
      %391 = vmatpush1.msra.mxu0 0.0
      %392 = vmatprep.subr.mxu0 0.0
      %393 = vmatpush1.msra.mxu0 0.0
      %394 = vmatprep.subr.mxu0 0.0
      %395 = vmatpush1.msra.mxu0 0.0
      %396 = vmatprep.subr.mxu0 0.0
      %397 = vmatpush1.msra.mxu0 0.0
      %398 = vmatprep.subr.mxu0 0.0
      %399 = vmatpush1.msra.mxu0 0.0
      %400 = vmatprep.subr.mxu0 0.0
      %401 = vmatpush1.msra.mxu0 0.0
      %402 = vmatprep.subr.mxu0 0.0
      %403 = vmatpush1.msra.mxu0 0.0
      %404 = vmatprep.subr.mxu0 0.0
      %405 = vmatpush1.msra.mxu0 0.0
      %406 = vmatprep.subr.mxu0 0.0
      %407 = vmatpush1.msra.mxu0 0.0
      %408 = vmatprep.subr.mxu0 0.0
      %409 = vmatpush1.msra.mxu0 0.0
      %410 = vmatprep.subr.mxu0 0.0
      %411 = vmatpush1.msra.mxu0 0.0
      %412 = vmatprep.subr.mxu0 0.0
      %413 = vmatpush1.msra.mxu0 0.0
      %414 = vmatprep.mubr.f32.mxu0 0.0
      %415 = vmatmul.mubr.f32.gmra.mrb[0].mxu0 %v277
      %v416 = vpop.f32.mrb[0].mxu0
      %v417 = vadd.f32 0.0, %v416
      %v418 = vpop.f32.mrb[0].mxu0
      %419 = vdwg.mxu0
      %v422 = vcombine.low %v346, %v348
      %v424 = vunpack.c.l.s4 1966171168
      %v425 = vunpack.c.0.s8 %v424
      %v426 = vlaneseq
      %v427 = vshrl.u32 %v426, 7
      %v428 = vsub.s32 %v425, %v427
      %v429 = vrot.slane %v422, %v428
      %v431 = vunpack.c.l.s4 1966171168
      %v432 = vunpack.c.0.s8 %v431
      %v433 = vlaneseq
      %v434 = vshrl.u32 %v433, 7
      %v435 = vsub.s32 %v432, %v434
      %v436 = vrot.slane %v429, %v435
      %v438 = vadd.f32 %v263, %v436
      %v439 = vxor.u32 %v438, 2147483648
      %v440 = vmul.f32 %v439, 1.442695
      %v441 = vpow.pop %v440
      %v442 = vadd.f32 %v441, 1.0
      %v443 = vrcp.pop %v442
      %v444 = vmul.f32 1.0, %v443
      %v445 = vadd.f32 %v417, %v246
      %v446 = vmul.f32 %v444, %v445
      %v448 = vrot.slane %v263, 2
      %v450 = vadd.f32 %v448, %v446
      %v451 = vtanh.pop %v450
      %v453 = vrot.slane %v444, 1
      %v455 = vsub.f32 1.0, %v453
      %v456 = vmul.f32 %v455, %v451
      %v457 = vmul.f32 %v453, %v254
      %v458 = vadd.f32 %v456, %v457
      %s459 = scalar_lea.vmem [#allocation10], %s249
      %460 = vst [vmem:[%s459] sm:$0x1] %v458
    $region46: #{tpu_custom_call.1} parent=1 // loop_footer
      %s251 = sadd.s32 %s249, 1
    $region47: #{tpu_custom_call.1} parent=1 // loop_footer_branch
      %248 = sbr.rel target = $region43
    $region48: #{tpu_custom_call.1} parent=1 // loop_exit
      _
    // While loop
    $region49: #{tpu_custom_call.1} parent=1 // loop_pre_header
      _
    $region50: #{tpu_custom_call.1} parent=1 // loop_header
      %s462 = sphi %s67, %s464
      %p463 = scmp.ge.s32.totalorder %s462, 8
    $region51: #{tpu_custom_call.1} parent=1 // loop_header_branch
      %466 = sbr.rel (%p463) target = $region55
    $region52: #{tpu_custom_call.1} parent=1 // loop_body
      %s467 = scalar_lea.vmem [#allocation10], %s462
      %468 = vst [vmem:[%s467] sm:$0x1] 0.0
    $region53: #{tpu_custom_call.1} parent=1 // loop_footer
      %s464 = sadd.s32 %s462, 1
    $region54: #{tpu_custom_call.1} parent=1 // loop_footer_branch
      %461 = sbr.rel target = $region50
    $region55: #{tpu_custom_call.1} parent=1 // loop_exit
      _
    // Predicated region
    $region56: #{tpu_custom_call.1} parent=1 // pred_check
      _
    $region57: #{tpu_custom_call.1} parent=1 // pred_check_branch
      %470 = sbr.rel (0) target = $region59
    $region58: #{tpu_custom_call.1} parent=1 // pred_region
      %s472 = ssub.s32 128, 128
      %473 = vsyncadd [#allocation6], %s472
      %s475 = sshll.u32 [#allocation10], 4
      %s476 = int_to_ptr.vmem [resolvable:$true] %s475
      %478 = dma.vmem_to_hbm [thread:$0]  %s476, 128, %s7, [#allocation6]
    $region59: #{tpu_custom_call.1} parent=1 // pred_fallthru
      _
    // Predicated region
    $region60: #{tpu_custom_call.1} parent=1 // pred_check
      _
    $region61: #{tpu_custom_call.1} parent=1 // pred_check_branch
      %480 = sbr.rel (0) target = $region63
    $region62: #{tpu_custom_call.1} parent=1 // pred_region
      %481 = dma.done [#allocation6], 128
    $region63: #{tpu_custom_call.1} parent=1 // pred_fallthru
      _
    %482 = vsyncpa [#allocation5], 1
    %483 = vsyncpa [#allocation8], 1
    %484 = vsyncpa [#allocation6], 1

</llo_original>
